<compile_context>
chip_gen: v5e
topology: v5e:2x2
jax: 0.10.0
libtpu: 0.0.40
codegen_flags: <defaults>
</compile_context>

<pallas_src>
import functools

import jax
import jax.numpy as jnp
from jax import lax
from jax.experimental import pallas as pl
from jax.experimental.pallas import tpu as pltpu


def _dense_block_kernel(x_ref, w_ref, bn_ref, o_ref, *,
                        num_layers, growth_rate, eps):
    B, C0, L = x_ref.shape
    G = growth_rate
    inv_n = jnp.float32(1.0 / (B * L))

    w_all = w_ref[...]       # (num_layers, G, 3*C_max)  bf16, zero padded
    bn_all = bn_ref[...]     # (num_layers, 2, C_max, 1) f32,  zero padded

    feat = x_ref[...].astype(jnp.float32)            # (B, C0, L)
    for i in range(num_layers):
        Ci = C0 + i * G
        h = feat                                     # (B, Ci, L)

        # --- BatchNorm1d (training mode, biased variance): one-pass stats ---
        s = jnp.sum(jnp.sum(h, axis=2, keepdims=True), axis=0, keepdims=True)
        ss = jnp.sum(jnp.sum(h * h, axis=2, keepdims=True), axis=0, keepdims=True)
        mean = s * inv_n                             # (1, Ci, 1)
        var = jnp.maximum(ss * inv_n - mean * mean, 0.0)
        gamma = bn_all[i, 0, :Ci, :][None]           # (1, Ci, 1)
        beta = bn_all[i, 1, :Ci, :][None]            # (1, Ci, 1)
        scale = gamma * lax.rsqrt(var + eps)
        shift = beta - mean * scale
        hn = jnp.maximum(h * scale + shift, 0.0)     # BN + ReLU, f32

        # --- Conv1d(k=3, pad=1, no bias): im2col taps along channels, one
        #     wide bf16 matmul per batch row, f32 accumulation on the MXU. ---
        hn_bf = hn.astype(jnp.bfloat16)
        zcol = jnp.zeros((B, Ci, 1), jnp.bfloat16)
        left = jnp.concatenate([zcol, hn_bf[:, :, :L - 1]], axis=2)   # h[l-1]
        right = jnp.concatenate([hn_bf[:, :, 1:], zcol], axis=2)      # h[l+1]
        hcat = jnp.concatenate([left, hn_bf, right], axis=1)          # (B,3Ci,L)
        wcat = w_all[i, :, :3 * Ci]                                   # (G, 3Ci)
        y = jnp.stack(
            [jnp.dot(wcat, hcat[bi], preferred_element_type=jnp.float32)
             for bi in range(B)],
            axis=0)                                                   # (B, G, L)

        feat = jnp.concatenate([feat, y], axis=1)    # dense concatenation

    o_ref[...] = feat.astype(o_ref.dtype)


def dense_block_forward(x, params, *, num_layers, growth_rate, eps=1e-5):
    """Pallas forward for _DenseBlock1D (training-mode BN, drop_rate=0)."""
    B, C0, L = x.shape
    G = growth_rate
    C_total = C0 + num_layers * G
    C_max = C0 + (num_layers - 1) * G          # widest layer input

    # --- pack all per-layer parameters into two small slabs (3 DMAs total) ---
    w_packed = jnp.zeros((num_layers, G, 3 * C_max), jnp.float32)
    bn_packed = jnp.zeros((num_layers, 2, C_max, 1), jnp.float32)
    for i in range(num_layers):
        Ci = C0 + i * G
        w = params[f"conv{i}_w"].astype(jnp.float32)        # (G, Ci, 3)
        assert w.shape == (G, Ci, 3), w.shape
        # tap order must match the [left, center, right] channel concat
        wcat = jnp.concatenate([w[:, :, 0], w[:, :, 1], w[:, :, 2]], axis=1)
        w_packed = w_packed.at[i, :, :3 * Ci].set(wcat)
        bn_packed = bn_packed.at[i, 0, :Ci, 0].set(
            params[f"bn{i}_w"].astype(jnp.float32))
        bn_packed = bn_packed.at[i, 1, :Ci, 0].set(
            params[f"bn{i}_b"].astype(jnp.float32))
    w_packed = w_packed.astype(jnp.bfloat16)   # MXU-native; accumulate in f32

    x = x.astype(jnp.float32)

    # Size scoped VMEM to the actual slab + temporaries.
    slab = B * C_total * L * 4
    vmem_est = 14 * slab + 2 * w_packed.size + 4 * bn_packed.size + (1 << 20)
    vmem_limit = int(min(max(vmem_est, 16 << 20), 32 << 20))

    kernel = functools.partial(
        _dense_block_kernel, num_layers=num_layers, growth_rate=G, eps=eps)

    vmem = pl.BlockSpec(memory_space=pltpu.MemorySpace.VMEM)
    return pl.pallas_call(
        kernel,
        out_shape=jax.ShapeDtypeStruct((B, C_total, L), jnp.float32),
        in_specs=[vmem, vmem, vmem],
        out_specs=vmem,
        compiler_params=pltpu.CompilerParams(vmem_limit_bytes=vmem_limit),
    )(x, w_packed, bn_packed)


def ref_dense_block(x, params, *, num_layers, growth_rate, eps=1e-5):
    """Pure-JAX reference mirroring the PyTorch module (training-mode BN)."""
    feat = x.astype(jnp.float32)
    for i in range(num_layers):
        h = feat
        m = h.mean(axis=(0, 2), keepdims=True)
        v = ((h - m) ** 2).mean(axis=(0, 2), keepdims=True)
        hn = (params[f"bn{i}_w"][None, :, None] * (h - m) / jnp.sqrt(v + eps)
              + params[f"bn{i}_b"][None, :, None])
        hn = jax.nn.relu(hn)
        y = lax.conv_general_dilated(
            hn, params[f"conv{i}_w"].astype(jnp.float32), (1,), [(1, 1)],
            dimension_numbers=("NCH", "OIH", "NCH"))
        feat = jnp.concatenate([feat, y], axis=1)
    return feat


if __name__ == "__main__":
    B, C0, G, L, num_layers = 2, 8, 8, 128, 4
    key = jax.random.PRNGKey(0)

    params = {}
    for i in range(num_layers):
        Ci = C0 + i * G
        kw, kg, kb, key = jax.random.split(key, 4)
        params[f"conv{i}_w"] = (jax.random.normal(kw, (G, Ci, 3), jnp.float32)
                                / jnp.sqrt(3.0 * Ci))
        params[f"bn{i}_w"] = 1.0 + 0.1 * jax.random.normal(kg, (Ci,), jnp.float32)
        params[f"bn{i}_b"] = 0.1 * jax.random.normal(kb, (Ci,), jnp.float32)
    key, kx = jax.random.split(key)
    x = jax.random.normal(kx, (B, C0, L), jnp.float32)

    out = dense_block_forward(x, params, num_layers=num_layers, growth_rate=G)
    out = jax.block_until_ready(out)

    ref = ref_dense_block(x, params, num_layers=num_layers, growth_rate=G)
    assert out.shape == (B, C0 + num_layers * G, L), out.shape
    err = float(jnp.max(jnp.abs(out - ref)))
    assert err < 5e-2, f"max abs err {err}"
    print("KERNEL_OK")
</pallas_src>

<mosaic_0001>
module attributes {stable_mosaic.version = 11 : i64} {
  func.func @_dense_block_kernel(%arg0: memref<2x8x128xf32, #tpu.memory_space<vmem>>, %arg1: memref<4x8x96xbf16, #tpu.memory_space<vmem>>, %arg2: memref<4x2x32x1xf32, #tpu.memory_space<vmem>>, %arg3: memref<2x40x128xf32, #tpu.memory_space<vmem>>) attributes {dimension_semantics = [], scalar_prefetch = 0 : i64, scratch_operands = 0 : i64, tpu.core_type = #tpu.core_type<tc>} {
    %c0 = arith.constant 0 : index
    %c0_0 = arith.constant 0 : index
    %c0_1 = arith.constant 0 : index
    %0 = vector.load %arg1[%c0, %c0_0, %c0_1] : memref<4x8x96xbf16, #tpu.memory_space<vmem>>, vector<4x8x96xbf16>
    %c0_2 = arith.constant 0 : index
    %c0_3 = arith.constant 0 : index
    %c0_4 = arith.constant 0 : index
    %c0_5 = arith.constant 0 : index
    %1 = vector.load %arg2[%c0_2, %c0_3, %c0_4, %c0_5] : memref<4x2x32x1xf32, #tpu.memory_space<vmem>>, vector<4x2x32x1xf32>
    %c0_6 = arith.constant 0 : index
    %c0_7 = arith.constant 0 : index
    %c0_8 = arith.constant 0 : index
    %2 = vector.load %arg0[%c0_6, %c0_7, %c0_8] : memref<2x8x128xf32, #tpu.memory_space<vmem>>, vector<2x8x128xf32>
    %cst = arith.constant dense<0.000000e+00> : vector<2x8xf32>
    %3 = vector.multi_reduction <add>, %2, %cst [2] : vector<2x8x128xf32> to vector<2x8xf32>
    %4 = vector.shape_cast %3 : vector<2x8xf32> to vector<2x8x1xf32>
    %cst_9 = arith.constant dense<0.000000e+00> : vector<8x1xf32>
    %5 = vector.multi_reduction <add>, %4, %cst_9 [0] : vector<2x8x1xf32> to vector<8x1xf32>
    %6 = vector.shape_cast %5 : vector<8x1xf32> to vector<1x8x1xf32>
    %7 = arith.mulf %2, %2 : vector<2x8x128xf32>
    %cst_10 = arith.constant dense<0.000000e+00> : vector<2x8xf32>
    %8 = vector.multi_reduction <add>, %7, %cst_10 [2] : vector<2x8x128xf32> to vector<2x8xf32>
    %9 = vector.shape_cast %8 : vector<2x8xf32> to vector<2x8x1xf32>
    %cst_11 = arith.constant dense<0.000000e+00> : vector<8x1xf32>
    %10 = vector.multi_reduction <add>, %9, %cst_11 [0] : vector<2x8x1xf32> to vector<8x1xf32>
    %11 = vector.shape_cast %10 : vector<8x1xf32> to vector<1x8x1xf32>
    %cst_12 = arith.constant 3.906250e-03 : f32
    %12 = vector.broadcast %cst_12 : f32 to vector<1x8x1xf32>
    %13 = arith.mulf %6, %12 : vector<1x8x1xf32>
    %cst_13 = arith.constant 3.906250e-03 : f32
    %14 = vector.broadcast %cst_13 : f32 to vector<1x8x1xf32>
    %15 = arith.mulf %11, %14 : vector<1x8x1xf32>
    %16 = arith.mulf %13, %13 : vector<1x8x1xf32>
    %17 = arith.subf %15, %16 : vector<1x8x1xf32>
    %cst_14 = arith.constant 0.000000e+00 : f32
    %18 = vector.broadcast %cst_14 : f32 to vector<1x8x1xf32>
    %19 = arith.maximumf %17, %18 : vector<1x8x1xf32>
    %20 = vector.extract_strided_slice %1 {offsets = [0, 0, 0, 0], sizes = [1, 1, 8, 1], strides = [1, 1, 1, 1]} : vector<4x2x32x1xf32> to vector<1x1x8x1xf32>
    %21 = vector.shape_cast %20 : vector<1x1x8x1xf32> to vector<8x1xf32>
    %22 = vector.shape_cast %21 : vector<8x1xf32> to vector<1x8x1xf32>
    %23 = vector.extract_strided_slice %1 {offsets = [0, 1, 0, 0], sizes = [1, 1, 8, 1], strides = [1, 1, 1, 1]} : vector<4x2x32x1xf32> to vector<1x1x8x1xf32>
    %24 = vector.shape_cast %23 : vector<1x1x8x1xf32> to vector<8x1xf32>
    %25 = vector.shape_cast %24 : vector<8x1xf32> to vector<1x8x1xf32>
    %cst_15 = arith.constant 9.99999974E-6 : f32
    %26 = vector.broadcast %cst_15 : f32 to vector<1x8x1xf32>
    %27 = arith.addf %19, %26 : vector<1x8x1xf32>
    %28 = math.rsqrt %27 : vector<1x8x1xf32>
    %29 = arith.mulf %22, %28 : vector<1x8x1xf32>
    %30 = arith.mulf %13, %29 : vector<1x8x1xf32>
    %31 = arith.subf %25, %30 : vector<1x8x1xf32>
    %32 = vector.broadcast %29 : vector<1x8x1xf32> to vector<2x8x128xf32>
    %33 = arith.mulf %2, %32 : vector<2x8x128xf32>
    %34 = vector.broadcast %31 : vector<1x8x1xf32> to vector<2x8x128xf32>
    %35 = arith.addf %33, %34 : vector<2x8x128xf32>
    %cst_16 = arith.constant 0.000000e+00 : f32
    %36 = vector.broadcast %cst_16 : f32 to vector<2x8x128xf32>
    %37 = arith.maximumf %35, %36 : vector<2x8x128xf32>
    %38 = arith.truncf %37 : vector<2x8x128xf32> to vector<2x8x128xbf16>
    %cst_17 = arith.constant 0.000000e+00 : bf16
    %39 = vector.broadcast %cst_17 : bf16 to vector<2x8x1xbf16>
    %40 = vector.extract_strided_slice %38 {offsets = [0, 0, 0], sizes = [2, 8, 127], strides = [1, 1, 1]} : vector<2x8x128xbf16> to vector<2x8x127xbf16>
    %41 = tpu.concatenate %39, %40 in 2 : vector<2x8x1xbf16>, vector<2x8x127xbf16> -> vector<2x8x128xbf16>
    %42 = vector.extract_strided_slice %38 {offsets = [0, 0, 1], sizes = [2, 8, 127], strides = [1, 1, 1]} : vector<2x8x128xbf16> to vector<2x8x127xbf16>
    %43 = tpu.concatenate %42, %39 in 2 : vector<2x8x127xbf16>, vector<2x8x1xbf16> -> vector<2x8x128xbf16>
    %44 = tpu.concatenate %41, %38, %43 in 1 : vector<2x8x128xbf16>, vector<2x8x128xbf16>, vector<2x8x128xbf16> -> vector<2x24x128xbf16>
    %45 = vector.extract_strided_slice %0 {offsets = [0, 0, 0], sizes = [1, 8, 24], strides = [1, 1, 1]} : vector<4x8x96xbf16> to vector<1x8x24xbf16>
    %46 = vector.shape_cast %45 : vector<1x8x24xbf16> to vector<8x24xbf16>
    %47 = vector.extract_strided_slice %44 {offsets = [0, 0, 0], sizes = [1, 24, 128], strides = [1, 1, 1]} : vector<2x24x128xbf16> to vector<1x24x128xbf16>
    %48 = vector.shape_cast %47 : vector<1x24x128xbf16> to vector<24x128xbf16>
    %cst_18 = arith.constant dense<0.000000e+00> : vector<8x128xf32>
    %49 = tpu.matmul %46, %48, %cst_18 {dimension_numbers = #tpu.dot_dimension_numbers<[1], [0], [0], [1], [0, 0, 1, 1], [], []>} : vector<8x24xbf16>, vector<24x128xbf16>, vector<8x128xf32> -> vector<8x128xf32>
    %50 = vector.extract_strided_slice %44 {offsets = [1, 0, 0], sizes = [1, 24, 128], strides = [1, 1, 1]} : vector<2x24x128xbf16> to vector<1x24x128xbf16>
    %51 = vector.shape_cast %50 : vector<1x24x128xbf16> to vector<24x128xbf16>
    %cst_19 = arith.constant dense<0.000000e+00> : vector<8x128xf32>
    %52 = tpu.matmul %46, %51, %cst_19 {dimension_numbers = #tpu.dot_dimension_numbers<[1], [0], [0], [1], [0, 0, 1, 1], [], []>} : vector<8x24xbf16>, vector<24x128xbf16>, vector<8x128xf32> -> vector<8x128xf32>
    %53 = vector.shape_cast %49 : vector<8x128xf32> to vector<1x8x128xf32>
    %54 = vector.shape_cast %52 : vector<8x128xf32> to vector<1x8x128xf32>
    %55 = tpu.concatenate %53, %54 in 0 : vector<1x8x128xf32>, vector<1x8x128xf32> -> vector<2x8x128xf32>
    %56 = tpu.concatenate %2, %55 in 1 : vector<2x8x128xf32>, vector<2x8x128xf32> -> vector<2x16x128xf32>
    %cst_20 = arith.constant dense<0.000000e+00> : vector<2x16xf32>
    %57 = vector.multi_reduction <add>, %56, %cst_20 [2] : vector<2x16x128xf32> to vector<2x16xf32>
    %58 = vector.shape_cast %57 : vector<2x16xf32> to vector<2x16x1xf32>
    %cst_21 = arith.constant dense<0.000000e+00> : vector<16x1xf32>
    %59 = vector.multi_reduction <add>, %58, %cst_21 [0] : vector<2x16x1xf32> to vector<16x1xf32>
    %60 = vector.shape_cast %59 : vector<16x1xf32> to vector<1x16x1xf32>
    %61 = arith.mulf %56, %56 : vector<2x16x128xf32>
    %cst_22 = arith.constant dense<0.000000e+00> : vector<2x16xf32>
    %62 = vector.multi_reduction <add>, %61, %cst_22 [2] : vector<2x16x128xf32> to vector<2x16xf32>
    %63 = vector.shape_cast %62 : vector<2x16xf32> to vector<2x16x1xf32>
    %cst_23 = arith.constant dense<0.000000e+00> : vector<16x1xf32>
    %64 = vector.multi_reduction <add>, %63, %cst_23 [0] : vector<2x16x1xf32> to vector<16x1xf32>
    %65 = vector.shape_cast %64 : vector<16x1xf32> to vector<1x16x1xf32>
    %cst_24 = arith.constant 3.906250e-03 : f32
    %66 = vector.broadcast %cst_24 : f32 to vector<1x16x1xf32>
    %67 = arith.mulf %60, %66 : vector<1x16x1xf32>
    %cst_25 = arith.constant 3.906250e-03 : f32
    %68 = vector.broadcast %cst_25 : f32 to vector<1x16x1xf32>
    %69 = arith.mulf %65, %68 : vector<1x16x1xf32>
    %70 = arith.mulf %67, %67 : vector<1x16x1xf32>
    %71 = arith.subf %69, %70 : vector<1x16x1xf32>
    %cst_26 = arith.constant 0.000000e+00 : f32
    %72 = vector.broadcast %cst_26 : f32 to vector<1x16x1xf32>
    %73 = arith.maximumf %71, %72 : vector<1x16x1xf32>
    %74 = vector.extract_strided_slice %1 {offsets = [1, 0, 0, 0], sizes = [1, 1, 16, 1], strides = [1, 1, 1, 1]} : vector<4x2x32x1xf32> to vector<1x1x16x1xf32>
    %75 = vector.shape_cast %74 : vector<1x1x16x1xf32> to vector<16x1xf32>
    %76 = vector.shape_cast %75 : vector<16x1xf32> to vector<1x16x1xf32>
    %77 = vector.extract_strided_slice %1 {offsets = [1, 1, 0, 0], sizes = [1, 1, 16, 1], strides = [1, 1, 1, 1]} : vector<4x2x32x1xf32> to vector<1x1x16x1xf32>
    %78 = vector.shape_cast %77 : vector<1x1x16x1xf32> to vector<16x1xf32>
    %79 = vector.shape_cast %78 : vector<16x1xf32> to vector<1x16x1xf32>
    %cst_27 = arith.constant 9.99999974E-6 : f32
    %80 = vector.broadcast %cst_27 : f32 to vector<1x16x1xf32>
    %81 = arith.addf %73, %80 : vector<1x16x1xf32>
    %82 = math.rsqrt %81 : vector<1x16x1xf32>
    %83 = arith.mulf %76, %82 : vector<1x16x1xf32>
    %84 = arith.mulf %67, %83 : vector<1x16x1xf32>
    %85 = arith.subf %79, %84 : vector<1x16x1xf32>
    %86 = vector.broadcast %83 : vector<1x16x1xf32> to vector<2x16x128xf32>
    %87 = arith.mulf %56, %86 : vector<2x16x128xf32>
    %88 = vector.broadcast %85 : vector<1x16x1xf32> to vector<2x16x128xf32>
    %89 = arith.addf %87, %88 : vector<2x16x128xf32>
    %cst_28 = arith.constant 0.000000e+00 : f32
    %90 = vector.broadcast %cst_28 : f32 to vector<2x16x128xf32>
    %91 = arith.maximumf %89, %90 : vector<2x16x128xf32>
    %92 = arith.truncf %91 : vector<2x16x128xf32> to vector<2x16x128xbf16>
    %cst_29 = arith.constant 0.000000e+00 : bf16
    %93 = vector.broadcast %cst_29 : bf16 to vector<2x16x1xbf16>
    %94 = vector.extract_strided_slice %92 {offsets = [0, 0, 0], sizes = [2, 16, 127], strides = [1, 1, 1]} : vector<2x16x128xbf16> to vector<2x16x127xbf16>
    %95 = tpu.concatenate %93, %94 in 2 : vector<2x16x1xbf16>, vector<2x16x127xbf16> -> vector<2x16x128xbf16>
    %96 = vector.extract_strided_slice %92 {offsets = [0, 0, 1], sizes = [2, 16, 127], strides = [1, 1, 1]} : vector<2x16x128xbf16> to vector<2x16x127xbf16>
    %97 = tpu.concatenate %96, %93 in 2 : vector<2x16x127xbf16>, vector<2x16x1xbf16> -> vector<2x16x128xbf16>
    %98 = tpu.concatenate %95, %92, %97 in 1 : vector<2x16x128xbf16>, vector<2x16x128xbf16>, vector<2x16x128xbf16> -> vector<2x48x128xbf16>
    %99 = vector.extract_strided_slice %0 {offsets = [1, 0, 0], sizes = [1, 8, 48], strides = [1, 1, 1]} : vector<4x8x96xbf16> to vector<1x8x48xbf16>
    %100 = vector.shape_cast %99 : vector<1x8x48xbf16> to vector<8x48xbf16>
    %101 = vector.extract_strided_slice %98 {offsets = [0, 0, 0], sizes = [1, 48, 128], strides = [1, 1, 1]} : vector<2x48x128xbf16> to vector<1x48x128xbf16>
    %102 = vector.shape_cast %101 : vector<1x48x128xbf16> to vector<48x128xbf16>
    %cst_30 = arith.constant dense<0.000000e+00> : vector<8x128xf32>
    %103 = tpu.matmul %100, %102, %cst_30 {dimension_numbers = #tpu.dot_dimension_numbers<[1], [0], [0], [1], [0, 0, 1, 1], [], []>} : vector<8x48xbf16>, vector<48x128xbf16>, vector<8x128xf32> -> vector<8x128xf32>
    %104 = vector.extract_strided_slice %98 {offsets = [1, 0, 0], sizes = [1, 48, 128], strides = [1, 1, 1]} : vector<2x48x128xbf16> to vector<1x48x128xbf16>
    %105 = vector.shape_cast %104 : vector<1x48x128xbf16> to vector<48x128xbf16>
    %cst_31 = arith.constant dense<0.000000e+00> : vector<8x128xf32>
    %106 = tpu.matmul %100, %105, %cst_31 {dimension_numbers = #tpu.dot_dimension_numbers<[1], [0], [0], [1], [0, 0, 1, 1], [], []>} : vector<8x48xbf16>, vector<48x128xbf16>, vector<8x128xf32> -> vector<8x128xf32>
    %107 = vector.shape_cast %103 : vector<8x128xf32> to vector<1x8x128xf32>
    %108 = vector.shape_cast %106 : vector<8x128xf32> to vector<1x8x128xf32>
    %109 = tpu.concatenate %107, %108 in 0 : vector<1x8x128xf32>, vector<1x8x128xf32> -> vector<2x8x128xf32>
    %110 = tpu.concatenate %56, %109 in 1 : vector<2x16x128xf32>, vector<2x8x128xf32> -> vector<2x24x128xf32>
    %cst_32 = arith.constant dense<0.000000e+00> : vector<2x24xf32>
    %111 = vector.multi_reduction <add>, %110, %cst_32 [2] : vector<2x24x128xf32> to vector<2x24xf32>
    %112 = vector.shape_cast %111 : vector<2x24xf32> to vector<2x24x1xf32>
    %cst_33 = arith.constant dense<0.000000e+00> : vector<24x1xf32>
    %113 = vector.multi_reduction <add>, %112, %cst_33 [0] : vector<2x24x1xf32> to vector<24x1xf32>
    %114 = vector.shape_cast %113 : vector<24x1xf32> to vector<1x24x1xf32>
    %115 = arith.mulf %110, %110 : vector<2x24x128xf32>
    %cst_34 = arith.constant dense<0.000000e+00> : vector<2x24xf32>
    %116 = vector.multi_reduction <add>, %115, %cst_34 [2] : vector<2x24x128xf32> to vector<2x24xf32>
    %117 = vector.shape_cast %116 : vector<2x24xf32> to vector<2x24x1xf32>
    %cst_35 = arith.constant dense<0.000000e+00> : vector<24x1xf32>
    %118 = vector.multi_reduction <add>, %117, %cst_35 [0] : vector<2x24x1xf32> to vector<24x1xf32>
    %119 = vector.shape_cast %118 : vector<24x1xf32> to vector<1x24x1xf32>
    %cst_36 = arith.constant 3.906250e-03 : f32
    %120 = vector.broadcast %cst_36 : f32 to vector<1x24x1xf32>
    %121 = arith.mulf %114, %120 : vector<1x24x1xf32>
    %cst_37 = arith.constant 3.906250e-03 : f32
    %122 = vector.broadcast %cst_37 : f32 to vector<1x24x1xf32>
    %123 = arith.mulf %119, %122 : vector<1x24x1xf32>
    %124 = arith.mulf %121, %121 : vector<1x24x1xf32>
    %125 = arith.subf %123, %124 : vector<1x24x1xf32>
    %cst_38 = arith.constant 0.000000e+00 : f32
    %126 = vector.broadcast %cst_38 : f32 to vector<1x24x1xf32>
    %127 = arith.maximumf %125, %126 : vector<1x24x1xf32>
    %128 = vector.extract_strided_slice %1 {offsets = [2, 0, 0, 0], sizes = [1, 1, 24, 1], strides = [1, 1, 1, 1]} : vector<4x2x32x1xf32> to vector<1x1x24x1xf32>
    %129 = vector.shape_cast %128 : vector<1x1x24x1xf32> to vector<24x1xf32>
    %130 = vector.shape_cast %129 : vector<24x1xf32> to vector<1x24x1xf32>
    %131 = vector.extract_strided_slice %1 {offsets = [2, 1, 0, 0], sizes = [1, 1, 24, 1], strides = [1, 1, 1, 1]} : vector<4x2x32x1xf32> to vector<1x1x24x1xf32>
    %132 = vector.shape_cast %131 : vector<1x1x24x1xf32> to vector<24x1xf32>
    %133 = vector.shape_cast %132 : vector<24x1xf32> to vector<1x24x1xf32>
    %cst_39 = arith.constant 9.99999974E-6 : f32
    %134 = vector.broadcast %cst_39 : f32 to vector<1x24x1xf32>
    %135 = arith.addf %127, %134 : vector<1x24x1xf32>
    %136 = math.rsqrt %135 : vector<1x24x1xf32>
    %137 = arith.mulf %130, %136 : vector<1x24x1xf32>
    %138 = arith.mulf %121, %137 : vector<1x24x1xf32>
    %139 = arith.subf %133, %138 : vector<1x24x1xf32>
    %140 = vector.broadcast %137 : vector<1x24x1xf32> to vector<2x24x128xf32>
    %141 = arith.mulf %110, %140 : vector<2x24x128xf32>
    %142 = vector.broadcast %139 : vector<1x24x1xf32> to vector<2x24x128xf32>
    %143 = arith.addf %141, %142 : vector<2x24x128xf32>
    %cst_40 = arith.constant 0.000000e+00 : f32
    %144 = vector.broadcast %cst_40 : f32 to vector<2x24x128xf32>
    %145 = arith.maximumf %143, %144 : vector<2x24x128xf32>
    %146 = arith.truncf %145 : vector<2x24x128xf32> to vector<2x24x128xbf16>
    %cst_41 = arith.constant 0.000000e+00 : bf16
    %147 = vector.broadcast %cst_41 : bf16 to vector<2x24x1xbf16>
    %148 = vector.extract_strided_slice %146 {offsets = [0, 0, 0], sizes = [2, 24, 127], strides = [1, 1, 1]} : vector<2x24x128xbf16> to vector<2x24x127xbf16>
    %149 = tpu.concatenate %147, %148 in 2 : vector<2x24x1xbf16>, vector<2x24x127xbf16> -> vector<2x24x128xbf16>
    %150 = vector.extract_strided_slice %146 {offsets = [0, 0, 1], sizes = [2, 24, 127], strides = [1, 1, 1]} : vector<2x24x128xbf16> to vector<2x24x127xbf16>
    %151 = tpu.concatenate %150, %147 in 2 : vector<2x24x127xbf16>, vector<2x24x1xbf16> -> vector<2x24x128xbf16>
    %152 = tpu.concatenate %149, %146, %151 in 1 : vector<2x24x128xbf16>, vector<2x24x128xbf16>, vector<2x24x128xbf16> -> vector<2x72x128xbf16>
    %153 = vector.extract_strided_slice %0 {offsets = [2, 0, 0], sizes = [1, 8, 72], strides = [1, 1, 1]} : vector<4x8x96xbf16> to vector<1x8x72xbf16>
    %154 = vector.shape_cast %153 : vector<1x8x72xbf16> to vector<8x72xbf16>
    %155 = vector.extract_strided_slice %152 {offsets = [0, 0, 0], sizes = [1, 72, 128], strides = [1, 1, 1]} : vector<2x72x128xbf16> to vector<1x72x128xbf16>
    %156 = vector.shape_cast %155 : vector<1x72x128xbf16> to vector<72x128xbf16>
    %cst_42 = arith.constant dense<0.000000e+00> : vector<8x128xf32>
    %157 = tpu.matmul %154, %156, %cst_42 {dimension_numbers = #tpu.dot_dimension_numbers<[1], [0], [0], [1], [0, 0, 1, 1], [], []>} : vector<8x72xbf16>, vector<72x128xbf16>, vector<8x128xf32> -> vector<8x128xf32>
    %158 = vector.extract_strided_slice %152 {offsets = [1, 0, 0], sizes = [1, 72, 128], strides = [1, 1, 1]} : vector<2x72x128xbf16> to vector<1x72x128xbf16>
    %159 = vector.shape_cast %158 : vector<1x72x128xbf16> to vector<72x128xbf16>
    %cst_43 = arith.constant dense<0.000000e+00> : vector<8x128xf32>
    %160 = tpu.matmul %154, %159, %cst_43 {dimension_numbers = #tpu.dot_dimension_numbers<[1], [0], [0], [1], [0, 0, 1, 1], [], []>} : vector<8x72xbf16>, vector<72x128xbf16>, vector<8x128xf32> -> vector<8x128xf32>
    %161 = vector.shape_cast %157 : vector<8x128xf32> to vector<1x8x128xf32>
    %162 = vector.shape_cast %160 : vector<8x128xf32> to vector<1x8x128xf32>
    %163 = tpu.concatenate %161, %162 in 0 : vector<1x8x128xf32>, vector<1x8x128xf32> -> vector<2x8x128xf32>
    %164 = tpu.concatenate %110, %163 in 1 : vector<2x24x128xf32>, vector<2x8x128xf32> -> vector<2x32x128xf32>
    %cst_44 = arith.constant dense<0.000000e+00> : vector<2x32xf32>
    %165 = vector.multi_reduction <add>, %164, %cst_44 [2] : vector<2x32x128xf32> to vector<2x32xf32>
    %166 = vector.shape_cast %165 : vector<2x32xf32> to vector<2x32x1xf32>
    %cst_45 = arith.constant dense<0.000000e+00> : vector<32x1xf32>
    %167 = vector.multi_reduction <add>, %166, %cst_45 [0] : vector<2x32x1xf32> to vector<32x1xf32>
    %168 = vector.shape_cast %167 : vector<32x1xf32> to vector<1x32x1xf32>
    %169 = arith.mulf %164, %164 : vector<2x32x128xf32>
    %cst_46 = arith.constant dense<0.000000e+00> : vector<2x32xf32>
    %170 = vector.multi_reduction <add>, %169, %cst_46 [2] : vector<2x32x128xf32> to vector<2x32xf32>
    %171 = vector.shape_cast %170 : vector<2x32xf32> to vector<2x32x1xf32>
    %cst_47 = arith.constant dense<0.000000e+00> : vector<32x1xf32>
    %172 = vector.multi_reduction <add>, %171, %cst_47 [0] : vector<2x32x1xf32> to vector<32x1xf32>
    %173 = vector.shape_cast %172 : vector<32x1xf32> to vector<1x32x1xf32>
    %cst_48 = arith.constant 3.906250e-03 : f32
    %174 = vector.broadcast %cst_48 : f32 to vector<1x32x1xf32>
    %175 = arith.mulf %168, %174 : vector<1x32x1xf32>
    %cst_49 = arith.constant 3.906250e-03 : f32
    %176 = vector.broadcast %cst_49 : f32 to vector<1x32x1xf32>
    %177 = arith.mulf %173, %176 : vector<1x32x1xf32>
    %178 = arith.mulf %175, %175 : vector<1x32x1xf32>
    %179 = arith.subf %177, %178 : vector<1x32x1xf32>
    %cst_50 = arith.constant 0.000000e+00 : f32
    %180 = vector.broadcast %cst_50 : f32 to vector<1x32x1xf32>
    %181 = arith.maximumf %179, %180 : vector<1x32x1xf32>
    %182 = vector.extract_strided_slice %1 {offsets = [3, 0, 0, 0], sizes = [1, 1, 32, 1], strides = [1, 1, 1, 1]} : vector<4x2x32x1xf32> to vector<1x1x32x1xf32>
    %183 = vector.shape_cast %182 : vector<1x1x32x1xf32> to vector<32x1xf32>
    %184 = vector.shape_cast %183 : vector<32x1xf32> to vector<1x32x1xf32>
    %185 = vector.extract_strided_slice %1 {offsets = [3, 1, 0, 0], sizes = [1, 1, 32, 1], strides = [1, 1, 1, 1]} : vector<4x2x32x1xf32> to vector<1x1x32x1xf32>
    %186 = vector.shape_cast %185 : vector<1x1x32x1xf32> to vector<32x1xf32>
    %187 = vector.shape_cast %186 : vector<32x1xf32> to vector<1x32x1xf32>
    %cst_51 = arith.constant 9.99999974E-6 : f32
    %188 = vector.broadcast %cst_51 : f32 to vector<1x32x1xf32>
    %189 = arith.addf %181, %188 : vector<1x32x1xf32>
    %190 = math.rsqrt %189 : vector<1x32x1xf32>
    %191 = arith.mulf %184, %190 : vector<1x32x1xf32>
    %192 = arith.mulf %175, %191 : vector<1x32x1xf32>
    %193 = arith.subf %187, %192 : vector<1x32x1xf32>
    %194 = vector.broadcast %191 : vector<1x32x1xf32> to vector<2x32x128xf32>
    %195 = arith.mulf %164, %194 : vector<2x32x128xf32>
    %196 = vector.broadcast %193 : vector<1x32x1xf32> to vector<2x32x128xf32>
    %197 = arith.addf %195, %196 : vector<2x32x128xf32>
    %cst_52 = arith.constant 0.000000e+00 : f32
    %198 = vector.broadcast %cst_52 : f32 to vector<2x32x128xf32>
    %199 = arith.maximumf %197, %198 : vector<2x32x128xf32>
    %200 = arith.truncf %199 : vector<2x32x128xf32> to vector<2x32x128xbf16>
    %cst_53 = arith.constant 0.000000e+00 : bf16
    %201 = vector.broadcast %cst_53 : bf16 to vector<2x32x1xbf16>
    %202 = vector.extract_strided_slice %200 {offsets = [0, 0, 0], sizes = [2, 32, 127], strides = [1, 1, 1]} : vector<2x32x128xbf16> to vector<2x32x127xbf16>
    %203 = tpu.concatenate %201, %202 in 2 : vector<2x32x1xbf16>, vector<2x32x127xbf16> -> vector<2x32x128xbf16>
    %204 = vector.extract_strided_slice %200 {offsets = [0, 0, 1], sizes = [2, 32, 127], strides = [1, 1, 1]} : vector<2x32x128xbf16> to vector<2x32x127xbf16>
    %205 = tpu.concatenate %204, %201 in 2 : vector<2x32x127xbf16>, vector<2x32x1xbf16> -> vector<2x32x128xbf16>
    %206 = tpu.concatenate %203, %200, %205 in 1 : vector<2x32x128xbf16>, vector<2x32x128xbf16>, vector<2x32x128xbf16> -> vector<2x96x128xbf16>
    %207 = vector.extract_strided_slice %0 {offsets = [3, 0, 0], sizes = [1, 8, 96], strides = [1, 1, 1]} : vector<4x8x96xbf16> to vector<1x8x96xbf16>
    %208 = vector.shape_cast %207 : vector<1x8x96xbf16> to vector<8x96xbf16>
    %209 = vector.extract_strided_slice %206 {offsets = [0, 0, 0], sizes = [1, 96, 128], strides = [1, 1, 1]} : vector<2x96x128xbf16> to vector<1x96x128xbf16>
    %210 = vector.shape_cast %209 : vector<1x96x128xbf16> to vector<96x128xbf16>
    %cst_54 = arith.constant dense<0.000000e+00> : vector<8x128xf32>
    %211 = tpu.matmul %208, %210, %cst_54 {dimension_numbers = #tpu.dot_dimension_numbers<[1], [0], [0], [1], [0, 0, 1, 1], [], []>} : vector<8x96xbf16>, vector<96x128xbf16>, vector<8x128xf32> -> vector<8x128xf32>
    %212 = vector.extract_strided_slice %206 {offsets = [1, 0, 0], sizes = [1, 96, 128], strides = [1, 1, 1]} : vector<2x96x128xbf16> to vector<1x96x128xbf16>
    %213 = vector.shape_cast %212 : vector<1x96x128xbf16> to vector<96x128xbf16>
    %cst_55 = arith.constant dense<0.000000e+00> : vector<8x128xf32>
    %214 = tpu.matmul %208, %213, %cst_55 {dimension_numbers = #tpu.dot_dimension_numbers<[1], [0], [0], [1], [0, 0, 1, 1], [], []>} : vector<8x96xbf16>, vector<96x128xbf16>, vector<8x128xf32> -> vector<8x128xf32>
    %215 = vector.shape_cast %211 : vector<8x128xf32> to vector<1x8x128xf32>
    %216 = vector.shape_cast %214 : vector<8x128xf32> to vector<1x8x128xf32>
    %217 = tpu.concatenate %215, %216 in 0 : vector<1x8x128xf32>, vector<1x8x128xf32> -> vector<2x8x128xf32>
    %218 = tpu.concatenate %164, %217 in 1 : vector<2x32x128xf32>, vector<2x8x128xf32> -> vector<2x40x128xf32>
    %c0_56 = arith.constant 0 : index
    %c0_57 = arith.constant 0 : index
    %c0_58 = arith.constant 0 : index
    %219 = vector.load %arg3[%c0_56, %c0_57, %c0_58] : memref<2x40x128xf32, #tpu.memory_space<vmem>>, vector<2x40x128xf32>
    tpu.vector_store %arg3[%c0_56, %c0_57, %c0_58], %218 {strides = array<i32>} : memref<2x40x128xf32, #tpu.memory_space<vmem>>, vector<2x40x128xf32>,
    return
  }
}

</mosaic_0001>

<llo_original>
// kernel: tpu_custom_call.1
$region0: #{tpu_custom_call.1}
  #allocation0 [shape = 'u32[]', space=smem, size = 0x4, offset = 0x4, fixed_abs, tag = 'smem constant byte address 0x4 - core index']
  #allocation1 [shape = 'u32[72,128]{1,0:T(1,128)}', space=vmem, size = 0x9000, scoped, tag = 'internal scratch']
  %s0 = inlined_call_operand.vmem [shape: f32[2,8,128], index: 0, kind: input, shape index: {}]
  %s1 = inlined_call_operand.vmem [shape: bf16[4,8,96], index: 1, kind: input, shape index: {}]
  %s2 = inlined_call_operand.vmem [shape: f32[4,2,32,1], index: 2, kind: input, shape index: {}]
  %s3 = inlined_call_operand.hbm [shape: f32[2,40,128], index: 3, kind: output, shape index: {}]
  %s4 = sld [smem:[#allocation0]]
  $region22: #{tpu_custom_call.1} parent=0
    _
  %s6 = ssub.s32 1, %s4
  %s7 = scalar_select 0, %s6, %s4
  $region1: #{tpu_custom_call.1} parent=0
    #allocation2 [shape = 'u8[40960]{0}', space=vmem, size = 0xa000, scoped, tag = 'output window, operand 0, single buffered']
    #allocation3 [shape = 's32[1]{0}', space=sflag, size = 0x4, scoped, tag = 'scoped memory for tpu_custom_call.1']
    %8 = vsyncpa [#allocation3], 0
    // Predicated region
    $region2: #{tpu_custom_call.1} parent=1 // pred_check
      _
    $region3: #{tpu_custom_call.1} parent=1 // pred_check_branch
      %10 = sbr.rel (0) target = $region5
    $region4: #{tpu_custom_call.1} parent=1 // pred_region
      _
    $region5: #{tpu_custom_call.1} parent=1 // pred_fallthru
      _
    // Predicated region
    $region6: #{tpu_custom_call.1} parent=1 // pred_check
      _
    $region7: #{tpu_custom_call.1} parent=1 // pred_check_branch
      %12 = sbr.rel (0) target = $region9
    $region8: #{tpu_custom_call.1} parent=1 // pred_region
      _
    $region9: #{tpu_custom_call.1} parent=1 // pred_fallthru
      _
    // Predicated region
    $region10: #{tpu_custom_call.1} parent=1 // pred_check
      _
    $region11: #{tpu_custom_call.1} parent=1 // pred_check_branch
      %14 = sbr.rel (0) target = $region13
    $region12: #{tpu_custom_call.1} parent=1 // pred_region
      _
    $region13: #{tpu_custom_call.1} parent=1 // pred_fallthru
      _
    %v16 = vld [vmem:[%s1] sm:$0xf]
    %v17 = vld [vmem:[%s1 + $0x4] sm:$0xf]
    %v18 = vld [vmem:[%s1 + $0x8] sm:$0xf]
    %v19 = vld [vmem:[%s1 + $0xc] sm:$0xf]
    %v20 = vld [vmem:[%s2] sm:$0xff]
    %v21 = vld [vmem:[%s2 + $0x20] sm:$0xff]
    %v22 = vld [vmem:[%s2 + $0x40] sm:$0xff]
    %v23 = vld [vmem:[%s2 + $0x48] sm:$0xff]
    %v24 = vld [vmem:[%s2 + $0x60] sm:$0xff]
    %v25 = vld [vmem:[%s2 + $0x68] sm:$0xff]
    %v26 = vld [vmem:[%s2 + $0x80] sm:$0xff]
    %v27 = vld [vmem:[%s2 + $0x88] sm:$0xff]
    %v28 = vld [vmem:[%s2 + $0x90] sm:$0xff]
    %v29 = vld [vmem:[%s2 + $0xa0] sm:$0xff]
    %v30 = vld [vmem:[%s2 + $0xa8] sm:$0xff]
    %v31 = vld [vmem:[%s2 + $0xb0] sm:$0xff]
    %v32 = vld [vmem:[%s2 + $0xc0] sm:$0xff]
    %v33 = vld [vmem:[%s2 + $0xc8] sm:$0xff]
    %v34 = vld [vmem:[%s2 + $0xd0] sm:$0xff]
    %v35 = vld [vmem:[%s2 + $0xd8] sm:$0xff]
    %v36 = vld [vmem:[%s2 + $0xe0] sm:$0xff]
    %v37 = vld [vmem:[%s2 + $0xe8] sm:$0xff]
    %v38 = vld [vmem:[%s2 + $0xf0] sm:$0xff]
    %v39 = vld [vmem:[%s2 + $0xf8] sm:$0xff]
    %v40 = vld [vmem:[%s0] sm:$0xff]
    %v41 = vld [vmem:[%s0 + $0x8] sm:$0xff]
    %42 = vadd.xlane.f32.xlu0 %v40
    %v43 = vpop.xlane.xlu0 %42
    %44 = vadd.xlane.f32.xlu0 %v41
    %v45 = vpop.xlane.xlu0 %44
    %v46 = vadd.f32 %v43, %v45
    %v47 = vmul.f32 %v40, %v40
    %v48 = vmul.f32 %v41, %v41
    %49 = vadd.xlane.f32.xlu0 %v47
    %v50 = vpop.xlane.xlu0 %49
    %51 = vadd.xlane.f32.xlu0 %v48
    %v52 = vpop.xlane.xlu0 %51
    %v53 = vadd.f32 %v50, %v52
    %v54 = vmul.f32 %v46, 0.00390625
    %v55 = vmul.f32 %v53, 0.00390625
    %v56 = vmul.f32 %v54, %v54
    %v57 = vsub.f32 %v55, %v56
    %v58 = vmax.f32 %v57, 0.0
    %v59 = vadd.f32 %v58, 1e-05
    %v60 = vrsqrt.pop %v59
    %v61 = vmul.f32 %v60, %v59
    %v62 = vmul.f32 %v61, %v60
    %v63 = vmul.f32 0.5, %v62
    %v64 = vsub.f32 1.5, %v63
    %v65 = vmul.f32 %v60, %v64
    %vm66 = vweird.f32 %v59
    %vm67 = vweird.f32 %v60
    %vm68 = vmor %vm66, %vm67
    %v69 = vsel %vm68, %v60, %v65
    %v70 = vmul.f32 %v20, %v69
    %v71 = vmul.f32 %v54, %v70
    %v72 = vsub.f32 %v21, %v71
    %74 = vset.pattern.permute.xlu0 0
    %75 = vperm.xlu0 %74, %v70
    %v76 = vpop.permute.xlu0 %75
    %v78 = vmul.f32 %v40, %v76
    %v79 = vmul.f32 %v41, %v76
    %81 = vset.pattern.permute.xlu0 0
    %82 = vperm.xlu0 %81, %v72
    %v83 = vpop.permute.xlu0 %82
    %v85 = vadd.f32 %v78, %v83
    %v86 = vadd.f32 %v79, %v83
    %v87 = vmax.f32 %v85, 0.0
    %v88 = vmax.f32 %v86, 0.0
    %v89 = vpack.c.bf16 %v87, %v87
    %v90 = vpack.c.bf16 %v88, %v88
    %v93 = vunpack.c.l.b16 %v89
    %v94 = vunpack.c.l.b16 %v90
    %v95 = vpack.c.b16 %v93, %v93
    %v96 = vpack.c.b16 %v94, %v94
    %97 = vrot.lane.b32.xlu0 %v95, 1
    %v98 = vpop.permute.xlu0 %97
    %99 = vrot.lane.b32.xlu0 %v96, 1
    %v100 = vpop.permute.xlu0 %99
    %vm101 = vcmask 7168
    %v104 = vsel %vm101, 0, %v98
    %v106 = vsel %vm101, 0, %v100
    %107 = vrot.lane.b32.xlu0 %v95, 127
    %v108 = vpop.permute.xlu0 %107
    %109 = vrot.lane.b32.xlu0 %v96, 127
    %v110 = vpop.permute.xlu0 %109
    %vm111 = vcmask 1039360
    %v113 = vsel %vm111, %v108, 0
    %v115 = vsel %vm111, %v110, 0
    %vm116 = vcmask 1043456
    %v118 = vsel %vm116, %v104, %v95
    %v121 = vsel %vm116, %v106, %v96
    %vm123 = vcmask 195584
    %v125 = vsel %vm123, %v16, 0
    %v127 = vsel %vm116, %v113, 0
    %129 = vmatpush.bf16.msra.mxu0 0
    %130 = vmatpush.bf16.msra.mxu0 0
    %131 = vmatpush.bf16.msra.mxu0 0
    %132 = vmatpush.bf16.msra.mxu0 0
    %133 = vmatpush.bf16.msra.mxu0 0
    %134 = vmatpush.bf16.msra.mxu0 0
    %135 = vmatpush.bf16.msra.mxu0 %v127
    %136 = vmatpush.bf16.msra.mxu0 %v118
    %137 = vmatmul.bf16.gmra.mxu0 %v125
    %v138 = vpop.f32.mrf.mxu0
    %v139 = vadd.f32 0.0, %v138
    %v140 = vpop.f32.mrf.mxu0
    %141 = vdwg.mxu0
    %v142 = vsel %vm116, %v115, 0
    %144 = vmatpush.bf16.msra.mxu0 0
    %145 = vmatpush.bf16.msra.mxu0 0
    %146 = vmatpush.bf16.msra.mxu0 0
    %147 = vmatpush.bf16.msra.mxu0 0
    %148 = vmatpush.bf16.msra.mxu0 0
    %149 = vmatpush.bf16.msra.mxu0 0
    %150 = vmatpush.bf16.msra.mxu0 %v142
    %151 = vmatpush.bf16.msra.mxu0 %v121
    %152 = vmatmul.bf16.gmra.mxu0 %v125
    %v153 = vpop.f32.mrf.mxu0
    %v154 = vadd.f32 0.0, %v153
    %v155 = vpop.f32.mrf.mxu0
    %156 = vdwg.mxu0
    %157 = vadd.xlane.f32.xlu0 %v139
    %v158 = vpop.xlane.xlu0 %157
    %159 = vadd.xlane.f32.xlu0 %v154
    %v160 = vpop.xlane.xlu0 %159
    %v161 = vadd.f32 %v158, %v160
    %v162 = vmul.f32 %v139, %v139
    %v163 = vmul.f32 %v154, %v154
    %164 = vadd.xlane.f32.xlu0 %v162
    %v165 = vpop.xlane.xlu0 %164
    %166 = vadd.xlane.f32.xlu0 %v163
    %v167 = vpop.xlane.xlu0 %166
    %v168 = vadd.f32 %v165, %v167
    %v169 = vmul.f32 %v161, 0.00390625
    %v170 = vmul.f32 %v168, 0.00390625
    %v171 = vmul.f32 %v169, %v169
    %v172 = vsub.f32 %v170, %v171
    %v173 = vmax.f32 %v172, 0.0
    %v174 = vadd.f32 %v173, 1e-05
    %v175 = vrsqrt.pop %v174
    %v176 = vmul.f32 %v175, %v174
    %v177 = vmul.f32 %v176, %v175
    %v178 = vmul.f32 0.5, %v177
    %v179 = vsub.f32 1.5, %v178
    %v180 = vmul.f32 %v175, %v179
    %vm181 = vweird.f32 %v174
    %vm182 = vweird.f32 %v175
    %vm183 = vmor %vm181, %vm182
    %v184 = vsel %vm183, %v175, %v180
    %v185 = vmul.f32 %v22, %v69
    %v186 = vmul.f32 %v23, %v184
    %v187 = vmul.f32 %v54, %v185
    %v188 = vmul.f32 %v169, %v186
    %v189 = vsub.f32 %v24, %v187
    %v190 = vsub.f32 %v25, %v188
    %192 = vset.pattern.permute.xlu0 0
    %193 = vperm.xlu0 %192, %v185
    %v194 = vpop.permute.xlu0 %193
    %197 = vset.pattern.permute.xlu0 0
    %198 = vperm.xlu0 %197, %v186
    %v199 = vpop.permute.xlu0 %198
    %v201 = vmul.f32 %v40, %v194
    %v202 = vmul.f32 %v139, %v199
    %v203 = vmul.f32 %v41, %v194
    %v204 = vmul.f32 %v154, %v199
    %206 = vset.pattern.permute.xlu0 0
    %207 = vperm.xlu0 %206, %v189
    %v208 = vpop.permute.xlu0 %207
    %211 = vset.pattern.permute.xlu0 0
    %212 = vperm.xlu0 %211, %v190
    %v213 = vpop.permute.xlu0 %212
    %v215 = vadd.f32 %v201, %v208
    %v216 = vadd.f32 %v202, %v213
    %v217 = vadd.f32 %v203, %v208
    %v218 = vadd.f32 %v204, %v213
    %v219 = vmax.f32 %v215, 0.0
    %v220 = vmax.f32 %v216, 0.0
    %v221 = vmax.f32 %v217, 0.0
    %v222 = vmax.f32 %v218, 0.0
    %v223 = vpack.c.bf16 %v219, %v219
    %v224 = vpack.c.bf16 %v220, %v220
    %v225 = vpack.c.bf16 %v221, %v221
    %v226 = vpack.c.bf16 %v222, %v222
    %v231 = vunpack.c.l.b16 %v223
    %v232 = vunpack.c.l.b16 %v224
    %v233 = vunpack.c.l.b16 %v225
    %v234 = vunpack.c.l.b16 %v226
    %v235 = vpack.c.b16 %v232, %v231
    %v236 = vpack.c.b16 %v234, %v233
    %237 = vrot.lane.b32.xlu0 %v235, 1
    %v238 = vpop.permute.xlu0 %237
    %239 = vrot.lane.b32.xlu0 %v236, 1
    %v240 = vpop.permute.xlu0 %239
    %v242 = vsel %vm101, 0, %v238
    %v245 = vsel %vm101, 0, %v240
    %247 = vrot.lane.b32.xlu0 %v235, 127
    %v248 = vpop.permute.xlu0 %247
    %249 = vrot.lane.b32.xlu0 %v236, 127
    %v250 = vpop.permute.xlu0 %249
    %v252 = vsel %vm111, %v248, 0
    %v255 = vsel %vm111, %v250, 0
    %vm259 = vcmask 392192
    %v261 = vsel %vm259, %v17, 0
    %263 = vmatpush.bf16.msra.mxu0 0
    %264 = vmatpush.bf16.msra.mxu0 0
    %265 = vmatpush.bf16.msra.mxu0 0
    %266 = vmatpush.bf16.msra.mxu0 0
    %267 = vmatpush.bf16.msra.mxu0 0
    %268 = vmatpush.bf16.msra.mxu0 %v252
    %269 = vmatpush.bf16.msra.mxu0 %v235
    %270 = vmatpush.bf16.msra.mxu0 %v242
    %271 = vmatmul.bf16.gmra.mxu0 %v261
    %v272 = vpop.f32.mrf.mxu0
    %v273 = vadd.f32 0.0, %v272
    %v274 = vpop.f32.mrf.mxu0
    %275 = vdwg.mxu0
    %276 = vmatpush.bf16.msra.mxu0 0
    %277 = vmatpush.bf16.msra.mxu0 0
    %278 = vmatpush.bf16.msra.mxu0 0
    %279 = vmatpush.bf16.msra.mxu0 0
    %280 = vmatpush.bf16.msra.mxu0 0
    %281 = vmatpush.bf16.msra.mxu0 %v255
    %282 = vmatpush.bf16.msra.mxu0 %v236
    %283 = vmatpush.bf16.msra.mxu0 %v245
    %284 = vmatmul.bf16.gmra.mxu0 %v261
    %v285 = vpop.f32.mrf.mxu0
    %v286 = vadd.f32 0.0, %v285
    %v287 = vpop.f32.mrf.mxu0
    %288 = vdwg.mxu0
    %289 = vadd.xlane.f32.xlu0 %v273
    %v290 = vpop.xlane.xlu0 %289
    %291 = vadd.xlane.f32.xlu0 %v286
    %v292 = vpop.xlane.xlu0 %291
    %v293 = vadd.f32 %v290, %v292
    %v294 = vmul.f32 %v273, %v273
    %v295 = vmul.f32 %v286, %v286
    %296 = vadd.xlane.f32.xlu0 %v294
    %v297 = vpop.xlane.xlu0 %296
    %298 = vadd.xlane.f32.xlu0 %v295
    %v299 = vpop.xlane.xlu0 %298
    %v300 = vadd.f32 %v297, %v299
    %v301 = vmul.f32 %v293, 0.00390625
    %v302 = vmul.f32 %v300, 0.00390625
    %v303 = vmul.f32 %v301, %v301
    %v304 = vsub.f32 %v302, %v303
    %v305 = vmax.f32 %v304, 0.0
    %v306 = vadd.f32 %v305, 1e-05
    %v307 = vrsqrt.pop %v306
    %v308 = vmul.f32 %v307, %v306
    %v309 = vmul.f32 %v308, %v307
    %v310 = vmul.f32 0.5, %v309
    %v311 = vsub.f32 1.5, %v310
    %v312 = vmul.f32 %v307, %v311
    %vm313 = vweird.f32 %v306
    %vm314 = vweird.f32 %v307
    %vm315 = vmor %vm313, %vm314
    %v316 = vsel %vm315, %v307, %v312
    %v317 = vmul.f32 %v26, %v69
    %v318 = vmul.f32 %v27, %v184
    %v319 = vmul.f32 %v28, %v316
    %v320 = vmul.f32 %v54, %v317
    %v321 = vmul.f32 %v169, %v318
    %v322 = vmul.f32 %v301, %v319
    %v323 = vsub.f32 %v29, %v320
    %v324 = vsub.f32 %v30, %v321
    %v325 = vsub.f32 %v31, %v322
    %327 = vset.pattern.permute.xlu0 0
    %328 = vperm.xlu0 %327, %v317
    %v329 = vpop.permute.xlu0 %328
    %332 = vset.pattern.permute.xlu0 0
    %333 = vperm.xlu0 %332, %v318
    %v334 = vpop.permute.xlu0 %333
    %337 = vset.pattern.permute.xlu0 0
    %338 = vperm.xlu0 %337, %v319
    %v339 = vpop.permute.xlu0 %338
    %v341 = vmul.f32 %v40, %v329
    %v342 = vmul.f32 %v139, %v334
    %v343 = vmul.f32 %v273, %v339
    %v344 = vmul.f32 %v41, %v329
    %v345 = vmul.f32 %v154, %v334
    %v346 = vmul.f32 %v286, %v339
    %348 = vset.pattern.permute.xlu0 0
    %349 = vperm.xlu0 %348, %v323
    %v350 = vpop.permute.xlu0 %349
    %353 = vset.pattern.permute.xlu0 0
    %354 = vperm.xlu0 %353, %v324
    %v355 = vpop.permute.xlu0 %354
    %358 = vset.pattern.permute.xlu0 0
    %359 = vperm.xlu0 %358, %v325
    %v360 = vpop.permute.xlu0 %359
    %v362 = vadd.f32 %v341, %v350
    %v363 = vadd.f32 %v342, %v355
    %v364 = vadd.f32 %v343, %v360
    %v365 = vadd.f32 %v344, %v350
    %v366 = vadd.f32 %v345, %v355
    %v367 = vadd.f32 %v346, %v360
    %v368 = vmax.f32 %v362, 0.0
    %v369 = vmax.f32 %v363, 0.0
    %v370 = vmax.f32 %v364, 0.0
    %v371 = vmax.f32 %v365, 0.0
    %v372 = vmax.f32 %v366, 0.0
    %v373 = vmax.f32 %v367, 0.0
    %v374 = vpack.c.bf16 %v368, %v368
    %v375 = vpack.c.bf16 %v369, %v369
    %v376 = vpack.c.bf16 %v370, %v370
    %v377 = vpack.c.bf16 %v371, %v371
    %v378 = vpack.c.bf16 %v372, %v372
    %v379 = vpack.c.bf16 %v373, %v373
    %v386 = vunpack.c.l.b16 %v374
    %v387 = vunpack.c.l.b16 %v375
    %v388 = vunpack.c.l.b16 %v376
    %v389 = vunpack.c.l.b16 %v377
    %v390 = vunpack.c.l.b16 %v378
    %v391 = vunpack.c.l.b16 %v379
    %v392 = vpack.c.b16 %v387, %v386
    %v393 = vpack.c.b16 %v388, %v388
    %v394 = vpack.c.b16 %v390, %v389
    %v395 = vpack.c.b16 %v391, %v391
    %396 = vrot.lane.b32.xlu0 %v392, 1
    %v397 = vpop.permute.xlu0 %396
    %398 = vrot.lane.b32.xlu0 %v393, 1
    %v399 = vpop.permute.xlu0 %398
    %400 = vrot.lane.b32.xlu0 %v394, 1
    %v401 = vpop.permute.xlu0 %400
    %402 = vrot.lane.b32.xlu0 %v395, 1
    %v403 = vpop.permute.xlu0 %402
    %v405 = vsel %vm101, 0, %v397
    %v408 = vsel %vm101, 0, %v399
    %v410 = vsel %vm101, 0, %v401
    %v413 = vsel %vm101, 0, %v403
    %414 = vrot.lane.b32.xlu0 %v392, 127
    %v415 = vpop.permute.xlu0 %414
    %416 = vrot.lane.b32.xlu0 %v393, 127
    %v417 = vpop.permute.xlu0 %416
    %418 = vrot.lane.b32.xlu0 %v394, 127
    %v419 = vpop.permute.xlu0 %418
    %420 = vrot.lane.b32.xlu0 %v395, 127
    %v421 = vpop.permute.xlu0 %420
    %v423 = vsel %vm111, %v415, 0
    %v426 = vsel %vm111, %v417, 0
    %v428 = vsel %vm111, %v419, 0
    %v431 = vsel %vm111, %v421, 0
    %v432 = vpack.c.b16 %v386, %v386
    %v433 = vpack.c.b16 %v388, %v387
    %v434 = vpack.c.b16 %v389, %v389
    %v435 = vpack.c.b16 %v391, %v390
    %v439 = vsel %vm116, %v408, %v432
    %v442 = vsel %vm116, %v413, %v434
    %vm444 = vcmask 588800
    %v446 = vsel %vm444, %v18, 0
    %v448 = vsel %vm116, %v426, 0
    %450 = vmatpush.bf16.msra.mxu0 0
    %451 = vmatpush.bf16.msra.mxu0 0
    %452 = vmatpush.bf16.msra.mxu0 0
    %453 = vmatpush.bf16.msra.mxu0 %v448
    %454 = vmatpush.bf16.msra.mxu0 %v423
    %455 = vmatpush.bf16.msra.mxu0 %v433
    %456 = vmatpush.bf16.msra.mxu0 %v439
    %457 = vmatpush.bf16.msra.mxu0 %v405
    %458 = vmatmul.bf16.gmra.mxu0 %v446
    %v459 = vpop.f32.mrf.mxu0
    %v460 = vadd.f32 0.0, %v459
    %v461 = vpop.f32.mrf.mxu0
    %462 = vdwg.mxu0
    %v463 = vsel %vm116, %v431, 0
    %465 = vmatpush.bf16.msra.mxu0 0
    %466 = vmatpush.bf16.msra.mxu0 0
    %467 = vmatpush.bf16.msra.mxu0 0
    %468 = vmatpush.bf16.msra.mxu0 %v463
    %469 = vmatpush.bf16.msra.mxu0 %v428
    %470 = vmatpush.bf16.msra.mxu0 %v435
    %471 = vmatpush.bf16.msra.mxu0 %v442
    %472 = vmatpush.bf16.msra.mxu0 %v410
    %473 = vmatmul.bf16.gmra.mxu0 %v446
    %v474 = vpop.f32.mrf.mxu0
    %v475 = vadd.f32 0.0, %v474
    %v476 = vpop.f32.mrf.mxu0
    %477 = vdwg.mxu0
    %478 = vadd.xlane.f32.xlu0 %v460
    %v479 = vpop.xlane.xlu0 %478
    %480 = vadd.xlane.f32.xlu0 %v475
    %v481 = vpop.xlane.xlu0 %480
    %v482 = vadd.f32 %v479, %v481
    %v483 = vmul.f32 %v460, %v460
    %v484 = vmul.f32 %v475, %v475
    %485 = vadd.xlane.f32.xlu0 %v483
    %v486 = vpop.xlane.xlu0 %485
    %487 = vadd.xlane.f32.xlu0 %v484
    %v488 = vpop.xlane.xlu0 %487
    %v489 = vadd.f32 %v486, %v488
    %v490 = vmul.f32 %v482, 0.00390625
    %v491 = vmul.f32 %v489, 0.00390625
    %v492 = vmul.f32 %v490, %v490
    %v493 = vsub.f32 %v491, %v492
    %v494 = vmax.f32 %v493, 0.0
    %v495 = vadd.f32 %v494, 1e-05
    %v496 = vrsqrt.pop %v495
    %v497 = vmul.f32 %v496, %v495
    %v498 = vmul.f32 %v497, %v496
    %v499 = vmul.f32 0.5, %v498
    %v500 = vsub.f32 1.5, %v499
    %v501 = vmul.f32 %v496, %v500
    %vm502 = vweird.f32 %v495
    %vm503 = vweird.f32 %v496
    %vm504 = vmor %vm502, %vm503
    %v505 = vsel %vm504, %v496, %v501
    %v506 = vmul.f32 %v32, %v69
    %v507 = vmul.f32 %v33, %v184
    %v508 = vmul.f32 %v34, %v316
    %v509 = vmul.f32 %v35, %v505
    %v510 = vmul.f32 %v54, %v506
    %v511 = vmul.f32 %v169, %v507
    %v512 = vmul.f32 %v301, %v508
    %v513 = vmul.f32 %v490, %v509
    %v514 = vsub.f32 %v36, %v510
    %v515 = vsub.f32 %v37, %v511
    %v516 = vsub.f32 %v38, %v512
    %v517 = vsub.f32 %v39, %v513
    %519 = vset.pattern.permute.xlu0 0
    %520 = vperm.xlu0 %519, %v506
    %v521 = vpop.permute.xlu0 %520
    %524 = vset.pattern.permute.xlu0 0
    %525 = vperm.xlu0 %524, %v507
    %v526 = vpop.permute.xlu0 %525
    %529 = vset.pattern.permute.xlu0 0
    %530 = vperm.xlu0 %529, %v508
    %v531 = vpop.permute.xlu0 %530
    %534 = vset.pattern.permute.xlu0 0
    %535 = vperm.xlu0 %534, %v509
    %v536 = vpop.permute.xlu0 %535
    %v538 = vmul.f32 %v40, %v521
    %v539 = vmul.f32 %v139, %v526
    %v540 = vmul.f32 %v273, %v531
    %v541 = vmul.f32 %v460, %v536
    %v542 = vmul.f32 %v41, %v521
    %v543 = vmul.f32 %v154, %v526
    %v544 = vmul.f32 %v286, %v531
    %v545 = vmul.f32 %v475, %v536
    %547 = vset.pattern.permute.xlu0 0
    %548 = vperm.xlu0 %547, %v514
    %v549 = vpop.permute.xlu0 %548
    %552 = vset.pattern.permute.xlu0 0
    %553 = vperm.xlu0 %552, %v515
    %v554 = vpop.permute.xlu0 %553
    %557 = vset.pattern.permute.xlu0 0
    %558 = vperm.xlu0 %557, %v516
    %v559 = vpop.permute.xlu0 %558
    %562 = vset.pattern.permute.xlu0 0
    %563 = vperm.xlu0 %562, %v517
    %v564 = vpop.permute.xlu0 %563
    %v566 = vadd.f32 %v538, %v549
    %v567 = vadd.f32 %v539, %v554
    %v568 = vadd.f32 %v540, %v559
    %v569 = vadd.f32 %v541, %v564
    %v570 = vadd.f32 %v542, %v549
    %v571 = vadd.f32 %v543, %v554
    %v572 = vadd.f32 %v544, %v559
    %v573 = vadd.f32 %v545, %v564
    %v574 = vmax.f32 %v566, 0.0
    %v575 = vmax.f32 %v567, 0.0
    %v576 = vmax.f32 %v568, 0.0
    %v577 = vmax.f32 %v569, 0.0
    %v578 = vmax.f32 %v570, 0.0
    %v579 = vmax.f32 %v571, 0.0
    %v580 = vmax.f32 %v572, 0.0
    %v581 = vmax.f32 %v573, 0.0
    %v582 = vpack.c.bf16 %v574, %v574
    %v583 = vpack.c.bf16 %v575, %v575
    %v584 = vpack.c.bf16 %v576, %v576
    %v585 = vpack.c.bf16 %v577, %v577
    %v586 = vpack.c.bf16 %v578, %v578
    %v587 = vpack.c.bf16 %v579, %v579
    %v588 = vpack.c.bf16 %v580, %v580
    %v589 = vpack.c.bf16 %v581, %v581
    %v598 = vunpack.c.l.b16 %v582
    %v599 = vunpack.c.l.b16 %v583
    %v600 = vunpack.c.l.b16 %v584
    %v601 = vunpack.c.l.b16 %v585
    %v602 = vunpack.c.l.b16 %v586
    %v603 = vunpack.c.l.b16 %v587
    %v604 = vunpack.c.l.b16 %v588
    %v605 = vunpack.c.l.b16 %v589
    %v606 = vpack.c.b16 %v599, %v598
    %v607 = vpack.c.b16 %v601, %v600
    %v608 = vpack.c.b16 %v603, %v602
    %v609 = vpack.c.b16 %v605, %v604
    %610 = vrot.lane.b32.xlu0 %v606, 1
    %v611 = vpop.permute.xlu0 %610
    %612 = vrot.lane.b32.xlu0 %v607, 1
    %v613 = vpop.permute.xlu0 %612
    %614 = vrot.lane.b32.xlu0 %v608, 1
    %v615 = vpop.permute.xlu0 %614
    %616 = vrot.lane.b32.xlu0 %v609, 1
    %v617 = vpop.permute.xlu0 %616
    %v619 = vsel %vm101, 0, %v611
    %v622 = vsel %vm101, 0, %v613
    %v625 = vsel %vm101, 0, %v615
    %v628 = vsel %vm101, 0, %v617
    %630 = vrot.lane.b32.xlu0 %v606, 127
    %v631 = vpop.permute.xlu0 %630
    %632 = vrot.lane.b32.xlu0 %v607, 127
    %v633 = vpop.permute.xlu0 %632
    %634 = vrot.lane.b32.xlu0 %v608, 127
    %v635 = vpop.permute.xlu0 %634
    %636 = vrot.lane.b32.xlu0 %v609, 127
    %v637 = vpop.permute.xlu0 %636
    %v639 = vsel %vm111, %v631, 0
    %v642 = vsel %vm111, %v633, 0
    %v645 = vsel %vm111, %v635, 0
    %v648 = vsel %vm111, %v637, 0
    %vm654 = vcmask 785408
    %v656 = vsel %vm654, %v19, 0
    %658 = vmatpush.bf16.msra.mxu0 0
    %659 = vmatpush.bf16.msra.mxu0 0
    %660 = vmatpush.bf16.msra.mxu0 %v642
    %661 = vmatpush.bf16.msra.mxu0 %v639
    %662 = vmatpush.bf16.msra.mxu0 %v607
    %663 = vmatpush.bf16.msra.mxu0 %v606
    %664 = vmatpush.bf16.msra.mxu0 %v622
    %665 = vmatpush.bf16.msra.mxu0 %v619
    %666 = vmatmul.bf16.gmra.mxu0 %v656
    %v667 = vpop.f32.mrf.mxu0
    %v668 = vadd.f32 0.0, %v667
    %v669 = vpop.f32.mrf.mxu0
    %670 = vdwg.mxu0
    %671 = vmatpush.bf16.msra.mxu0 0
    %672 = vmatpush.bf16.msra.mxu0 0
    %673 = vmatpush.bf16.msra.mxu0 %v648
    %674 = vmatpush.bf16.msra.mxu0 %v645
    %675 = vmatpush.bf16.msra.mxu0 %v609
    %676 = vmatpush.bf16.msra.mxu0 %v608
    %677 = vmatpush.bf16.msra.mxu0 %v628
    %678 = vmatpush.bf16.msra.mxu0 %v625
    %679 = vmatmul.bf16.gmra.mxu0 %v656
    %v680 = vpop.f32.mrf.mxu0
    %v681 = vadd.f32 0.0, %v680
    %v682 = vpop.f32.mrf.mxu0
    %683 = vdwg.mxu0
    %684 = vst [vmem:[#allocation2] sm:$0xff] %v40
    %685 = vst [vmem:[#allocation2 + $0x8] sm:$0xff] %v139
    %686 = vst [vmem:[#allocation2 + $0x10] sm:$0xff] %v273
    %687 = vst [vmem:[#allocation2 + $0x18] sm:$0xff] %v460
    %688 = vst [vmem:[#allocation2 + $0x20] sm:$0xff] %v668
    %689 = vst [vmem:[#allocation2 + $0x28] sm:$0xff] %v41
    %690 = vst [vmem:[#allocation2 + $0x30] sm:$0xff] %v154
    %691 = vst [vmem:[#allocation2 + $0x38] sm:$0xff] %v286
    %692 = vst [vmem:[#allocation2 + $0x40] sm:$0xff] %v475
    %693 = vst [vmem:[#allocation2 + $0x48] sm:$0xff] %v681
    // Predicated region
    $region14: #{tpu_custom_call.1} parent=1 // pred_check
      _
    $region15: #{tpu_custom_call.1} parent=1 // pred_check_branch
      %695 = sbr.rel (0) target = $region17
    $region16: #{tpu_custom_call.1} parent=1 // pred_region
      %697 = vsyncadd [#allocation3], 0
      %s698 = sshll.u32 [#allocation2], 4
      %s699 = int_to_ptr.vmem [resolvable:$true] %s698
      %s700 = sshll.u32 %s3, 4
      %s701 = int_to_ptr.hbm [resolvable:$true] %s700
      %706 = dma.vmem_to_hbm [thread:$0]  %s699, 1280, %s701, [#allocation3], 128, 128, 8
    $region17: #{tpu_custom_call.1} parent=1 // pred_fallthru
      _
    // Predicated region
    $region18: #{tpu_custom_call.1} parent=1 // pred_check
      _
    $region19: #{tpu_custom_call.1} parent=1 // pred_check_branch
      %708 = sbr.rel (0) target = $region21
    $region20: #{tpu_custom_call.1} parent=1 // pred_region
      %710 = dma.done [#allocation3], 1280
    $region21: #{tpu_custom_call.1} parent=1 // pred_fallthru
      _
    %711 = vsyncpa [#allocation3], 1

</llo_original>
